<compile_context>
chip_gen: v5e
topology: v5e:2x2
jax: 0.10.0
libtpu: 0.0.40
codegen_flags: <defaults>
</compile_context>

<pallas_src>
import functools

import jax
import jax.numpy as jnp
from jax import lax
from jax.experimental import pallas as pl
from jax.experimental.pallas import tpu as pltpu

BN_EPS = 1e-5


# ----------------------------- fused kernel -------------------------------- #

def _bn_relu(y, gamma, beta):
    """Training-mode BatchNorm1d (biased batch var, two-pass form) + ReLU, f32.

    y:     (batch, F) f32
    gamma: (1, F) f32
    beta:  (1, F) f32
    """
    mean = jnp.mean(y, axis=0, keepdims=True)            # (1, F)
    d = y - mean                                          # (B, F)
    var = jnp.mean(d * d, axis=0, keepdims=True)          # (1, F), biased
    scale = gamma * lax.rsqrt(var + BN_EPS)               # (1, F)
    return jnp.maximum(d * scale + beta, 0.0)             # (B, F)


def _generator_kernel(n_hidden,
                      x_ref, w0_ref, g0_ref, b0_ref,
                      wh_ref, gh_ref, bh_ref,
                      wout_ref, bout_ref,
                      o_ref):
    # ---- first GLayer: single merged bf16 dot, f32 accumulate ----
    y = jnp.dot(x_ref[...], w0_ref[...], preferred_element_type=jnp.float32)
    x = _bn_relu(y, g0_ref[...], b0_ref[...])

    def layer(x, w, gamma, beta):
        y = jnp.dot(x.astype(jnp.bfloat16), w, preferred_element_type=jnp.float32)
        return _bn_relu(y, gamma, beta)

    # ---- hidden GLayers over stacked (L, 128, 128) bf16 weights ----
    if n_hidden <= 4:
        for l in range(n_hidden):                                    # static unroll
            x = layer(x, wh_ref[l], gh_ref[l], bh_ref[l])
    else:
        def body(l, x):                                              # bounded code size
            return layer(x, wh_ref[l], gh_ref[l], bh_ref[l])
        x = lax.fori_loop(0, n_hidden, body, x)

    # ---- final out projection (lane-dense padded output; bias kept, f32) ----
    o_ref[...] = (jnp.dot(x.astype(jnp.bfloat16), wout_ref[...],
                          preferred_element_type=jnp.float32)
                  + bout_ref[...])


# ------------------------------- wrapper ------------------------------------ #

_VMEM = pl.BlockSpec(memory_space=pltpu.MemorySpace.VMEM)


def generator_forward(params, noise, context):
    # Wrapper-side concat of two tiny arrays is essentially free in XLA.
    x = jnp.concatenate([noise.astype(jnp.float32), context.astype(jnp.float32)],
                        axis=1).astype(jnp.bfloat16)
    batch = x.shape[0]
    n_hidden, hidden = params["w_hidden"].shape[0], params["w_hidden"].shape[1]
    out_pad = params["w_out"].shape[1]
    data_dim = params["data_dim"]
    assert n_hidden >= 1, "fused kernel expects nlayers >= 3"

    flops = 2 * batch * (x.shape[1] * hidden
                         + n_hidden * hidden * hidden
                         + hidden * out_pad)
    transcendentals = (n_hidden + 1) * hidden  # one rsqrt per BN feature
    bytes_accessed = (
        x.size * 2
        + (params["w0"].size + params["w_hidden"].size + params["w_out"].size) * 2
        + (params["gamma0"].size + params["beta0"].size
           + params["gamma_hidden"].size + params["beta_hidden"].size
           + params["b_out"].size) * 4
        + batch * out_pad * 4)

    kernel = functools.partial(_generator_kernel, n_hidden)
    out_padded = pl.pallas_call(
        kernel,
        out_shape=jax.ShapeDtypeStruct((batch, out_pad), jnp.float32),
        in_specs=[_VMEM] * 9,
        out_specs=_VMEM,
        cost_estimate=pl.CostEstimate(flops=flops,
                                      transcendentals=transcendentals,
                                      bytes_accessed=bytes_accessed),
    )(x,
      params["w0"], params["gamma0"], params["beta0"],
      params["w_hidden"], params["gamma_hidden"], params["beta_hidden"],
      params["w_out"], params["b_out"])

    return out_padded[:, :data_dim]


# ------------------------- parameter initialization ------------------------- #

def init_generator_params(key, noise_dim, context_dim, data_dim, nlayers, hidden=128):
    """Deterministic synthetic init mirroring the PyTorch module's shapes.

    Kernel-facing weights are stored in bfloat16 (w_out/b_out zero-padded to a
    multiple of 128 lanes).  Full-precision copies are kept under params["f32"]
    for the reference only.  GLayer Linear biases are intentionally not created:
    training-mode BatchNorm's batch-mean subtraction cancels them exactly.
    """
    n_hidden = nlayers - 2
    assert n_hidden >= 1
    indim0 = noise_dim + context_dim
    out_pad = ((data_dim + 127) // 128) * 128

    key, k_w0 = jax.random.split(key)
    bound0 = 1.0 / (indim0 ** 0.5)
    w0 = jax.random.uniform(k_w0, (indim0, hidden), jnp.float32, -bound0, bound0)

    bound_h = 1.0 / (hidden ** 0.5)
    w_hidden = []
    for _ in range(n_hidden):
        key, k_w = jax.random.split(key)
        w_hidden.append(
            jax.random.uniform(k_w, (hidden, hidden), jnp.float32, -bound_h, bound_h))
    w_hidden = jnp.stack(w_hidden, axis=0)

    key, k_wo, k_bo = jax.random.split(key, 3)
    w_out = jax.random.uniform(k_wo, (hidden, data_dim), jnp.float32, -bound_h, bound_h)
    b_out = jax.random.uniform(k_bo, (data_dim,), jnp.float32, -bound_h, bound_h)

    w_out_pad = jnp.zeros((hidden, out_pad), jnp.float32).at[:, :data_dim].set(w_out)
    b_out_pad = jnp.zeros((1, out_pad), jnp.float32).at[:, :data_dim].set(b_out)

    return {
        "data_dim": data_dim,
        # first GLayer
        "w0": w0.astype(jnp.bfloat16),                                # (indim0, 128) bf16
        "gamma0": jnp.ones((1, hidden), jnp.float32),
        "beta0": jnp.zeros((1, hidden), jnp.float32),
        # hidden GLayers, stacked
        "w_hidden": w_hidden.astype(jnp.bfloat16),                    # (L, 128, 128) bf16
        "gamma_hidden": jnp.ones((n_hidden, 1, hidden), jnp.float32),  # (L, 1, 128)
        "beta_hidden": jnp.zeros((n_hidden, 1, hidden), jnp.float32),  # (L, 1, 128)
        # out Linear, lane-dense padded
        "w_out": w_out_pad.astype(jnp.bfloat16),                      # (128, out_pad) bf16
        "b_out": b_out_pad,                                           # (1, out_pad) f32
        # full-precision copies for reference checks only
        "f32": {"w0": w0, "w_hidden": w_hidden,
                "w_out": w_out, "b_out": b_out.reshape(1, -1)},
    }


# --------------------------- pure-JAX references ----------------------------- #

def _bn_relu_ref(y, gamma, beta):
    mean = jnp.mean(y, axis=0, keepdims=True)
    d = y - mean
    var = jnp.mean(d * d, axis=0, keepdims=True)
    return jnp.maximum(d * (gamma * lax.rsqrt(var + BN_EPS)) + beta, 0.0)


def generator_reference_bf16(params, noise, context):
    """Mirrors the kernel's bf16-operand / f32-accumulate arithmetic exactly."""
    x = jnp.concatenate([noise.astype(jnp.float32), context.astype(jnp.float32)],
                        axis=1).astype(jnp.bfloat16)
    y = jnp.dot(x, params["w0"], preferred_element_type=jnp.float32)
    x = _bn_relu_ref(y, params["gamma0"], params["beta0"])
    for l in range(params["w_hidden"].shape[0]):
        y = jnp.dot(x.astype(jnp.bfloat16), params["w_hidden"][l],
                    preferred_element_type=jnp.float32)
        x = _bn_relu_ref(y, params["gamma_hidden"][l], params["beta_hidden"][l])
    out = (jnp.dot(x.astype(jnp.bfloat16), params["w_out"],
                   preferred_element_type=jnp.float32) + params["b_out"])
    return out[:, :params["data_dim"]]


def generator_reference_f32(params, noise, context):
    """Full-precision reference of the original module (train-mode BN)."""
    hp = lax.Precision.HIGHEST
    f = params["f32"]
    x = jnp.concatenate([noise.astype(jnp.float32), context.astype(jnp.float32)], axis=1)
    x = _bn_relu_ref(jnp.dot(x, f["w0"], precision=hp), params["gamma0"], params["beta0"])
    for l in range(f["w_hidden"].shape[0]):
        x = _bn_relu_ref(jnp.dot(x, f["w_hidden"][l], precision=hp),
                         params["gamma_hidden"][l], params["beta_hidden"][l])
    return jnp.dot(x, f["w_out"], precision=hp) + f["b_out"]


# --------------------------------- main -------------------------------------- #

if __name__ == "__main__":
    # Small shapes consistent with the module:
    #   noise_dim=8, context_dim=8 -> first GLayer input = 16, hidden = 128,
    #   data_dim=4, nlayers=3 (one 128x128 hidden GLayer), batch=8 (sublane mult.).
    noise_dim, context_dim, data_dim, nlayers, batch = 8, 8, 4, 3, 8

    key = jax.random.PRNGKey(0)
    key, k_params, k_noise, k_ctx = jax.random.split(key, 4)

    params = init_generator_params(k_params, noise_dim, context_dim, data_dim, nlayers)
    noise = jax.random.normal(k_noise, (batch, noise_dim), jnp.float32)
    context = jax.random.normal(k_ctx, (batch, context_dim), jnp.float32)

    out = jax.block_until_ready(generator_forward(params, noise, context))

    assert out.shape == (batch, data_dim), out.shape
    assert out.dtype == jnp.float32, out.dtype

    # Tight check against a reference that mirrors the kernel's bf16/f32 math.
    ref_bf16 = jax.block_until_ready(generator_reference_bf16(params, noise, context))
    assert jnp.allclose(out, ref_bf16, rtol=5e-3, atol=5e-3), \
        f"bf16-mirror max abs diff {float(jnp.max(jnp.abs(out - ref_bf16)))}"

    # Loose check against the full-precision module semantics (bf16 weight quant).
    ref_f32 = jax.block_until_ready(generator_reference_f32(params, noise, context))
    assert jnp.allclose(out, ref_f32, rtol=5e-2, atol=5e-2), \
        f"f32-reference max abs diff {float(jnp.max(jnp.abs(out - ref_f32)))}"

    print("KERNEL_OK")
</pallas_src>

<mosaic_0001>
module attributes {stable_mosaic.version = 11 : i64} {
  func.func @_generator_kernel(%arg0: memref<8x16xbf16, #tpu.memory_space<vmem>>, %arg1: memref<16x128xbf16, #tpu.memory_space<vmem>>, %arg2: memref<1x128xf32, #tpu.memory_space<vmem>>, %arg3: memref<1x128xf32, #tpu.memory_space<vmem>>, %arg4: memref<1x128x128xbf16, #tpu.memory_space<vmem>>, %arg5: memref<1x1x128xf32, #tpu.memory_space<vmem>>, %arg6: memref<1x1x128xf32, #tpu.memory_space<vmem>>, %arg7: memref<128x128xbf16, #tpu.memory_space<vmem>>, %arg8: memref<1x128xf32, #tpu.memory_space<vmem>>, %arg9: memref<8x128xf32, #tpu.memory_space<vmem>>) attributes {dimension_semantics = [], scalar_prefetch = 0 : i64, scratch_operands = 0 : i64, tpu.core_type = #tpu.core_type<tc>} {
    %c0 = arith.constant 0 : index
    %c0_0 = arith.constant 0 : index
    %0 = vector.load %arg0[%c0, %c0_0] : memref<8x16xbf16, #tpu.memory_space<vmem>>, vector<8x16xbf16>
    %c0_1 = arith.constant 0 : index
    %c0_2 = arith.constant 0 : index
    %1 = vector.load %arg1[%c0_1, %c0_2] : memref<16x128xbf16, #tpu.memory_space<vmem>>, vector<16x128xbf16>
    %cst = arith.constant dense<0.000000e+00> : vector<8x128xf32>
    %2 = tpu.matmul %0, %1, %cst {dimension_numbers = #tpu.dot_dimension_numbers<[1], [0], [0], [1], [0, 0, 1, 1], [], []>} : vector<8x16xbf16>, vector<16x128xbf16>, vector<8x128xf32> -> vector<8x128xf32>
    %c0_3 = arith.constant 0 : index
    %c0_4 = arith.constant 0 : index
    %3 = vector.load %arg2[%c0_3, %c0_4] : memref<1x128xf32, #tpu.memory_space<vmem>>, vector<1x128xf32>
    %c0_5 = arith.constant 0 : index
    %c0_6 = arith.constant 0 : index
    %4 = vector.load %arg3[%c0_5, %c0_6] : memref<1x128xf32, #tpu.memory_space<vmem>>, vector<1x128xf32>
    %cst_7 = arith.constant dense<0.000000e+00> : vector<128xf32>
    %5 = vector.multi_reduction <add>, %2, %cst_7 [0] : vector<8x128xf32> to vector<128xf32>
    %6 = vector.shape_cast %5 : vector<128xf32> to vector<1x128xf32>
    %cst_8 = arith.constant 8.000000e+00 : f32
    %7 = vector.broadcast %cst_8 : f32 to vector<1x128xf32>
    %8 = arith.divf %6, %7 : vector<1x128xf32>
    %9 = vector.broadcast %8 : vector<1x128xf32> to vector<8x128xf32>
    %10 = arith.subf %2, %9 : vector<8x128xf32>
    %11 = arith.mulf %10, %10 : vector<8x128xf32>
    %cst_9 = arith.constant dense<0.000000e+00> : vector<128xf32>
    %12 = vector.multi_reduction <add>, %11, %cst_9 [0] : vector<8x128xf32> to vector<128xf32>
    %13 = vector.shape_cast %12 : vector<128xf32> to vector<1x128xf32>
    %cst_10 = arith.constant 8.000000e+00 : f32
    %14 = vector.broadcast %cst_10 : f32 to vector<1x128xf32>
    %15 = arith.divf %13, %14 : vector<1x128xf32>
    %cst_11 = arith.constant 9.99999974E-6 : f32
    %16 = vector.broadcast %cst_11 : f32 to vector<1x128xf32>
    %17 = arith.addf %15, %16 : vector<1x128xf32>
    %18 = math.rsqrt %17 : vector<1x128xf32>
    %19 = arith.mulf %3, %18 : vector<1x128xf32>
    %20 = vector.broadcast %19 : vector<1x128xf32> to vector<8x128xf32>
    %21 = arith.mulf %10, %20 : vector<8x128xf32>
    %22 = vector.broadcast %4 : vector<1x128xf32> to vector<8x128xf32>
    %23 = arith.addf %21, %22 : vector<8x128xf32>
    %cst_12 = arith.constant 0.000000e+00 : f32
    %24 = vector.broadcast %cst_12 : f32 to vector<8x128xf32>
    %25 = arith.maximumf %23, %24 : vector<8x128xf32>
    %c0_13 = arith.constant 0 : index
    %c0_14 = arith.constant 0 : index
    %c0_15 = arith.constant 0 : index
    %26 = vector.load %arg4[%c0_13, %c0_14, %c0_15] : memref<1x128x128xbf16, #tpu.memory_space<vmem>>, vector<1x128x128xbf16>
    %27 = vector.shape_cast %26 : vector<1x128x128xbf16> to vector<128x128xbf16>
    %c0_16 = arith.constant 0 : index
    %c0_17 = arith.constant 0 : index
    %c0_18 = arith.constant 0 : index
    %28 = vector.load %arg5[%c0_16, %c0_17, %c0_18] : memref<1x1x128xf32, #tpu.memory_space<vmem>>, vector<1x1x128xf32>
    %29 = vector.shape_cast %28 : vector<1x1x128xf32> to vector<1x128xf32>
    %c0_19 = arith.constant 0 : index
    %c0_20 = arith.constant 0 : index
    %c0_21 = arith.constant 0 : index
    %30 = vector.load %arg6[%c0_19, %c0_20, %c0_21] : memref<1x1x128xf32, #tpu.memory_space<vmem>>, vector<1x1x128xf32>
    %31 = vector.shape_cast %30 : vector<1x1x128xf32> to vector<1x128xf32>
    %32 = arith.truncf %25 : vector<8x128xf32> to vector<8x128xbf16>
    %cst_22 = arith.constant dense<0.000000e+00> : vector<8x128xf32>
    %33 = tpu.matmul %32, %27, %cst_22 {dimension_numbers = #tpu.dot_dimension_numbers<[1], [0], [0], [1], [0, 0, 1, 1], [], []>} : vector<8x128xbf16>, vector<128x128xbf16>, vector<8x128xf32> -> vector<8x128xf32>
    %cst_23 = arith.constant dense<0.000000e+00> : vector<128xf32>
    %34 = vector.multi_reduction <add>, %33, %cst_23 [0] : vector<8x128xf32> to vector<128xf32>
    %35 = vector.shape_cast %34 : vector<128xf32> to vector<1x128xf32>
    %cst_24 = arith.constant 8.000000e+00 : f32
    %36 = vector.broadcast %cst_24 : f32 to vector<1x128xf32>
    %37 = arith.divf %35, %36 : vector<1x128xf32>
    %38 = vector.broadcast %37 : vector<1x128xf32> to vector<8x128xf32>
    %39 = arith.subf %33, %38 : vector<8x128xf32>
    %40 = arith.mulf %39, %39 : vector<8x128xf32>
    %cst_25 = arith.constant dense<0.000000e+00> : vector<128xf32>
    %41 = vector.multi_reduction <add>, %40, %cst_25 [0] : vector<8x128xf32> to vector<128xf32>
    %42 = vector.shape_cast %41 : vector<128xf32> to vector<1x128xf32>
    %cst_26 = arith.constant 8.000000e+00 : f32
    %43 = vector.broadcast %cst_26 : f32 to vector<1x128xf32>
    %44 = arith.divf %42, %43 : vector<1x128xf32>
    %cst_27 = arith.constant 9.99999974E-6 : f32
    %45 = vector.broadcast %cst_27 : f32 to vector<1x128xf32>
    %46 = arith.addf %44, %45 : vector<1x128xf32>
    %47 = math.rsqrt %46 : vector<1x128xf32>
    %48 = arith.mulf %29, %47 : vector<1x128xf32>
    %49 = vector.broadcast %48 : vector<1x128xf32> to vector<8x128xf32>
    %50 = arith.mulf %39, %49 : vector<8x128xf32>
    %51 = vector.broadcast %31 : vector<1x128xf32> to vector<8x128xf32>
    %52 = arith.addf %50, %51 : vector<8x128xf32>
    %cst_28 = arith.constant 0.000000e+00 : f32
    %53 = vector.broadcast %cst_28 : f32 to vector<8x128xf32>
    %54 = arith.maximumf %52, %53 : vector<8x128xf32>
    %55 = arith.truncf %54 : vector<8x128xf32> to vector<8x128xbf16>
    %c0_29 = arith.constant 0 : index
    %c0_30 = arith.constant 0 : index
    %56 = vector.load %arg7[%c0_29, %c0_30] : memref<128x128xbf16, #tpu.memory_space<vmem>>, vector<128x128xbf16>
    %cst_31 = arith.constant dense<0.000000e+00> : vector<8x128xf32>
    %57 = tpu.matmul %55, %56, %cst_31 {dimension_numbers = #tpu.dot_dimension_numbers<[1], [0], [0], [1], [0, 0, 1, 1], [], []>} : vector<8x128xbf16>, vector<128x128xbf16>, vector<8x128xf32> -> vector<8x128xf32>
    %c0_32 = arith.constant 0 : index
    %c0_33 = arith.constant 0 : index
    %58 = vector.load %arg8[%c0_32, %c0_33] : memref<1x128xf32, #tpu.memory_space<vmem>>, vector<1x128xf32>
    %59 = vector.broadcast %58 : vector<1x128xf32> to vector<8x128xf32>
    %60 = arith.addf %57, %59 : vector<8x128xf32>
    %c0_34 = arith.constant 0 : index
    %c0_35 = arith.constant 0 : index
    %61 = vector.load %arg9[%c0_34, %c0_35] : memref<8x128xf32, #tpu.memory_space<vmem>>, vector<8x128xf32>
    tpu.vector_store %arg9[%c0_34, %c0_35], %60 {strides = array<i32>} : memref<8x128xf32, #tpu.memory_space<vmem>>, vector<8x128xf32>,
    return
  }
}

</mosaic_0001>

<llo_original>
// kernel: tpu_custom_call.1
$region0: #{tpu_custom_call.1}
  #allocation0 [shape = 'u32[]', space=smem, size = 0x4, offset = 0x4, fixed_abs, tag = 'smem constant byte address 0x4 - core index']
  #allocation1 [shape = 'u32[72,128]{1,0:T(1,128)}', space=vmem, size = 0x9000, scoped, tag = 'internal scratch']
  %s0 = inlined_call_operand.hbm [shape: bf16[8,16], index: 0, kind: input, shape index: {}]
  %s1 = inlined_call_operand.hbm [shape: bf16[16,128], index: 1, kind: input, shape index: {}]
  %s2 = inlined_call_operand.vmem [shape: f32[1,128], index: 2, kind: input, shape index: {}]
  %s3 = inlined_call_operand.vmem [shape: f32[1,128], index: 3, kind: input, shape index: {}]
  %s4 = inlined_call_operand.hbm [shape: bf16[1,128,128], index: 4, kind: input, shape index: {}]
  %s5 = inlined_call_operand.vmem [shape: f32[1,1,128], index: 5, kind: input, shape index: {}]
  %s6 = inlined_call_operand.vmem [shape: f32[1,1,128], index: 6, kind: input, shape index: {}]
  %s7 = inlined_call_operand.hbm [shape: bf16[128,128], index: 7, kind: input, shape index: {}]
  %s8 = inlined_call_operand.vmem [shape: f32[1,128], index: 8, kind: input, shape index: {}]
  %s9 = inlined_call_operand.hbm [shape: f32[8,128], index: 9, kind: output, shape index: {}]
  %s10 = sld [smem:[#allocation0]]
  $region62: #{tpu_custom_call.1} parent=0
    _
  %s12 = ssub.s32 1, %s10
  %s13 = scalar_select 0, %s12, %s10
  $region1: #{tpu_custom_call.1} parent=0
    #allocation2 [shape = 'u8[2048]{0}', space=vmem, size = 0x800, scoped, tag = 'input window, operand 0, single buffered']
    #allocation3 [shape = 's32[1]{0}', space=sflag, size = 0x4, scoped, tag = 'scoped memory for tpu_custom_call.1']
    #allocation4 [shape = 's32[1]{0}', space=sflag, size = 0x4, scoped, tag = 'scoped memory for tpu_custom_call.1']
    #allocation5 [shape = 'u8[4096]{0}', space=vmem, size = 0x1000, scoped, tag = 'input window, operand 1, single buffered']
    #allocation6 [shape = 's32[1]{0}', space=sflag, size = 0x4, scoped, tag = 'scoped memory for tpu_custom_call.1']
    #allocation7 [shape = 'u8[32768]{0}', space=vmem, size = 0x8000, scoped, tag = 'input window, operand 4, single buffered']
    #allocation8 [shape = 'u8[32768]{0}', space=vmem, size = 0x8000, scoped, tag = 'input window, operand 7, single buffered']
    #allocation9 [shape = 's32[1]{0}', space=sflag, size = 0x4, scoped, tag = 'scoped memory for tpu_custom_call.1']
    #allocation10 [shape = 'u8[4096]{0}', space=vmem, size = 0x1000, scoped, tag = 'output window, operand 0, single buffered']
    %14 = vsyncpa [#allocation3], 0
    %15 = vsyncpa [#allocation6], 0
    %16 = vsyncpa [#allocation9], 0
    %17 = vsyncpa [#allocation4], 0
    // Predicated region
    $region2: #{tpu_custom_call.1} parent=1 // pred_check
      _
    $region3: #{tpu_custom_call.1} parent=1 // pred_check_branch
      %19 = sbr.rel (0) target = $region5
    $region4: #{tpu_custom_call.1} parent=1 // pred_region
      %21 = vsyncadd [#allocation3], 0
      %s23 = sshll.u32 %s0, 4
      %s24 = int_to_ptr.hbm [resolvable:$true] %s23
      %s25 = sshll.u32 [#allocation2], 4
      %s26 = int_to_ptr.vmem [resolvable:$true] %s25
      %28 = dma.hbm_to_vmem [thread:$0]  %s24, 64, %s26, [#allocation3]
    $region5: #{tpu_custom_call.1} parent=1 // pred_fallthru
      _
    // Predicated region
    $region6: #{tpu_custom_call.1} parent=1 // pred_check
      _
    $region7: #{tpu_custom_call.1} parent=1 // pred_check_branch
      %30 = sbr.rel (0) target = $region9
    $region8: #{tpu_custom_call.1} parent=1 // pred_region
      %32 = vsyncadd [#allocation6], 0
      %s33 = sshll.u32 %s1, 4
      %s34 = int_to_ptr.hbm [resolvable:$true] %s33
      %s35 = sshll.u32 [#allocation5], 4
      %s36 = int_to_ptr.vmem [resolvable:$true] %s35
      %41 = dma.hbm_to_vmem [thread:$0]  %s34, 128, %s36, [#allocation6], 64, 64, 4
    $region9: #{tpu_custom_call.1} parent=1 // pred_fallthru
      _
    // Predicated region
    $region10: #{tpu_custom_call.1} parent=1 // pred_check
      _
    $region11: #{tpu_custom_call.1} parent=1 // pred_check_branch
      %43 = sbr.rel (0) target = $region13
    $region12: #{tpu_custom_call.1} parent=1 // pred_region
      _
    $region13: #{tpu_custom_call.1} parent=1 // pred_fallthru
      _
    // Predicated region
    $region14: #{tpu_custom_call.1} parent=1 // pred_check
      _
    $region15: #{tpu_custom_call.1} parent=1 // pred_check_branch
      %45 = sbr.rel (0) target = $region17
    $region16: #{tpu_custom_call.1} parent=1 // pred_region
      _
    $region17: #{tpu_custom_call.1} parent=1 // pred_fallthru
      _
    // Predicated region
    $region18: #{tpu_custom_call.1} parent=1 // pred_check
      _
    $region19: #{tpu_custom_call.1} parent=1 // pred_check_branch
      %47 = sbr.rel (0) target = $region21
    $region20: #{tpu_custom_call.1} parent=1 // pred_region
      %49 = vsyncadd [#allocation6], 0
      %s50 = sshll.u32 %s4, 4
      %s51 = int_to_ptr.hbm [resolvable:$true] %s50
      %s52 = sshll.u32 [#allocation7], 4
      %s53 = int_to_ptr.vmem [resolvable:$true] %s52
      %58 = dma.hbm_to_vmem [thread:$0]  %s51, 1024, %s53, [#allocation6], 64, 64, 4
    $region21: #{tpu_custom_call.1} parent=1 // pred_fallthru
      _
    // Predicated region
    $region22: #{tpu_custom_call.1} parent=1 // pred_check
      _
    $region23: #{tpu_custom_call.1} parent=1 // pred_check_branch
      %60 = sbr.rel (0) target = $region25
    $region24: #{tpu_custom_call.1} parent=1 // pred_region
      _
    $region25: #{tpu_custom_call.1} parent=1 // pred_fallthru
      _
    // Predicated region
    $region26: #{tpu_custom_call.1} parent=1 // pred_check
      _
    $region27: #{tpu_custom_call.1} parent=1 // pred_check_branch
      %62 = sbr.rel (0) target = $region29
    $region28: #{tpu_custom_call.1} parent=1 // pred_region
      _
    $region29: #{tpu_custom_call.1} parent=1 // pred_fallthru
      _
    // Predicated region
    $region30: #{tpu_custom_call.1} parent=1 // pred_check
      _
    $region31: #{tpu_custom_call.1} parent=1 // pred_check_branch
      %64 = sbr.rel (0) target = $region33
    $region32: #{tpu_custom_call.1} parent=1 // pred_region
      %66 = vsyncadd [#allocation9], 0
      %s67 = sshll.u32 %s7, 4
      %s68 = int_to_ptr.hbm [resolvable:$true] %s67
      %s69 = sshll.u32 [#allocation8], 4
      %s70 = int_to_ptr.vmem [resolvable:$true] %s69
      %75 = dma.hbm_to_vmem [thread:$0]  %s68, 1024, %s70, [#allocation9], 64, 64, 4
    $region33: #{tpu_custom_call.1} parent=1 // pred_fallthru
      _
    // Predicated region
    $region34: #{tpu_custom_call.1} parent=1 // pred_check
      _
    $region35: #{tpu_custom_call.1} parent=1 // pred_check_branch
      %77 = sbr.rel (0) target = $region37
    $region36: #{tpu_custom_call.1} parent=1 // pred_region
      _
    $region37: #{tpu_custom_call.1} parent=1 // pred_fallthru
      _
    // Predicated region
    $region38: #{tpu_custom_call.1} parent=1 // pred_check
      _
    $region39: #{tpu_custom_call.1} parent=1 // pred_check_branch
      %79 = sbr.rel (0) target = $region41
    $region40: #{tpu_custom_call.1} parent=1 // pred_region
      %81 = dma.done [#allocation3], 64
    $region41: #{tpu_custom_call.1} parent=1 // pred_fallthru
      _
    // Predicated region
    $region42: #{tpu_custom_call.1} parent=1 // pred_check
      _
    $region43: #{tpu_custom_call.1} parent=1 // pred_check_branch
      %83 = sbr.rel (0) target = $region45
    $region44: #{tpu_custom_call.1} parent=1 // pred_region
      %85 = dma.done [#allocation6], 128
    $region45: #{tpu_custom_call.1} parent=1 // pred_fallthru
      _
    // Predicated region
    $region46: #{tpu_custom_call.1} parent=1 // pred_check
      _
    $region47: #{tpu_custom_call.1} parent=1 // pred_check_branch
      %87 = sbr.rel (0) target = $region49
    $region48: #{tpu_custom_call.1} parent=1 // pred_region
      %89 = dma.done [#allocation6], 1024
    $region49: #{tpu_custom_call.1} parent=1 // pred_fallthru
      _
    // Predicated region
    $region50: #{tpu_custom_call.1} parent=1 // pred_check
      _
    $region51: #{tpu_custom_call.1} parent=1 // pred_check_branch
      %91 = sbr.rel (0) target = $region53
    $region52: #{tpu_custom_call.1} parent=1 // pred_region
      %93 = dma.done [#allocation9], 1024
    $region53: #{tpu_custom_call.1} parent=1 // pred_fallthru
      _
    %v95 = vld [vmem:[#allocation2] sm:$0xf]
    %v96 = vld [vmem:[#allocation5] sm:$0xf]
    %v97 = vld [vmem:[#allocation5 + $0x4] sm:$0xf]
    %v100 = vunpack.c.l.b16 %v96
    %v101 = vunpack.c.l.b16 %v97
    %v102 = vpack.c.b16 %v101, %v100
    %vm104 = vcmask 130048
    %v106 = vsel %vm104, %v95, 0
    %108 = vmatpush.bf16.msra.mxu0 0
    %109 = vmatpush.bf16.msra.mxu0 0
    %110 = vmatpush.bf16.msra.mxu0 0
    %111 = vmatpush.bf16.msra.mxu0 0
    %112 = vmatpush.bf16.msra.mxu0 0
    %113 = vmatpush.bf16.msra.mxu0 0
    %114 = vmatpush.bf16.msra.mxu0 0
    %115 = vmatpush.bf16.msra.mxu0 %v102
    %116 = vmatmul.bf16.gmra.mxu0 %v106
    %v117 = vpop.f32.mrf.mxu0
    %v118 = vadd.f32 0.0, %v117
    %v119 = vpop.f32.mrf.mxu0
    %120 = vdwg.mxu0
    %v121 = vld [vmem:[%s2] sm:$0x1]
    %v122 = vld [vmem:[%s3] sm:$0x1]
    %v123 = vrot.slane %v118, 4
    %v124 = vadd.f32 %v118, %v123
    %v125 = vrot.slane %v124, 2
    %v126 = vadd.f32 %v124, %v125
    %v127 = vrot.slane %v126, 1
    %v128 = vadd.f32 %v126, %v127
    %v129 = vrcp.pop 8.0
    %v130 = vmul.f32 8.0, %v129
    %v131 = vsub.f32 1.0, %v130
    %v132 = vmul.f32 %v129, %v131
    %v133 = vadd.f32 %v129, %v132
    %vm134 = vweird.f32 %v129
    %v135 = vsel %vm134, %v129, %v133
    %v136 = vmul.f32 %v128, %v135
    %v137 = vsub.f32 %v118, %v136
    %v138 = vmul.f32 %v137, %v137
    %v139 = vrot.slane %v138, 4
    %v140 = vadd.f32 %v138, %v139
    %v141 = vrot.slane %v140, 2
    %v142 = vadd.f32 %v140, %v141
    %v143 = vrot.slane %v142, 1
    %v144 = vadd.f32 %v142, %v143
    %v145 = vmul.f32 %v144, %v135
    %v146 = vadd.f32 %v145, 1e-05
    %v147 = vrsqrt.pop %v146
    %v148 = vmul.f32 %v147, %v146
    %v149 = vmul.f32 %v148, %v147
    %v150 = vmul.f32 0.5, %v149
    %v151 = vsub.f32 1.5, %v150
    %v152 = vmul.f32 %v147, %v151
    %vm153 = vweird.f32 %v146
    %vm154 = vweird.f32 %v147
    %vm155 = vmor %vm153, %vm154
    %v156 = vsel %vm155, %v147, %v152
    %v157 = vmul.f32 %v121, %v156
    %v159 = vperm.slane %v157, 0
    %v161 = vmul.f32 %v137, %v159
    %v163 = vperm.slane %v122, 0
    %v165 = vadd.f32 %v161, %v163
    %v166 = vmax.f32 %v165, 0.0
    %v167 = vld [vmem:[#allocation7] sm:$0xf]
    %v168 = vld [vmem:[#allocation7 + $0x4] sm:$0xf]
    %v169 = vld [vmem:[#allocation7 + $0x8] sm:$0xf]
    %v170 = vld [vmem:[#allocation7 + $0xc] sm:$0xf]
    %v171 = vld [vmem:[#allocation7 + $0x10] sm:$0xf]
    %v172 = vld [vmem:[#allocation7 + $0x14] sm:$0xf]
    %v173 = vld [vmem:[#allocation7 + $0x18] sm:$0xf]
    %v174 = vld [vmem:[#allocation7 + $0x1c] sm:$0xf]
    %v175 = vld [vmem:[#allocation7 + $0x20] sm:$0xf]
    %v176 = vld [vmem:[#allocation7 + $0x24] sm:$0xf]
    %v177 = vld [vmem:[#allocation7 + $0x28] sm:$0xf]
    %v178 = vld [vmem:[#allocation7 + $0x2c] sm:$0xf]
    %v179 = vld [vmem:[#allocation7 + $0x30] sm:$0xf]
    %v180 = vld [vmem:[#allocation7 + $0x34] sm:$0xf]
    %v181 = vld [vmem:[#allocation7 + $0x38] sm:$0xf]
    %v182 = vld [vmem:[#allocation7 + $0x3c] sm:$0xf]
    %v183 = vld [vmem:[%s5] sm:$0x1]
    %v184 = vld [vmem:[%s6] sm:$0x1]
    %v185 = vpack.c.bf16 %v166, %v166
    %v202 = vunpack.c.l.b16 %v167
    %v203 = vunpack.c.l.b16 %v168
    %v204 = vunpack.c.l.b16 %v169
    %v205 = vunpack.c.l.b16 %v170
    %v206 = vunpack.c.l.b16 %v171
    %v207 = vunpack.c.l.b16 %v172
    %v208 = vunpack.c.l.b16 %v173
    %v209 = vunpack.c.l.b16 %v174
    %v210 = vunpack.c.l.b16 %v175
    %v211 = vunpack.c.l.b16 %v176
    %v212 = vunpack.c.l.b16 %v177
    %v213 = vunpack.c.l.b16 %v178
    %v214 = vunpack.c.l.b16 %v179
    %v215 = vunpack.c.l.b16 %v180
    %v216 = vunpack.c.l.b16 %v181
    %v217 = vunpack.c.l.b16 %v182
    %v218 = vpack.c.b16 %v203, %v202
    %v219 = vpack.c.b16 %v205, %v204
    %v220 = vpack.c.b16 %v207, %v206
    %v221 = vpack.c.b16 %v209, %v208
    %v222 = vpack.c.b16 %v211, %v210
    %v223 = vpack.c.b16 %v213, %v212
    %v224 = vpack.c.b16 %v215, %v214
    %v225 = vpack.c.b16 %v217, %v216
    %234 = vmatpush.bf16.msra.mxu0 %v225
    %235 = vmatpush.bf16.msra.mxu0 %v224
    %236 = vmatpush.bf16.msra.mxu0 %v223
    %237 = vmatpush.bf16.msra.mxu0 %v222
    %238 = vmatpush.bf16.msra.mxu0 %v221
    %239 = vmatpush.bf16.msra.mxu0 %v220
    %240 = vmatpush.bf16.msra.mxu0 %v219
    %241 = vmatpush.bf16.msra.mxu0 %v218
    %242 = vmatmul.bf16.gmra.mxu0 %v185
    %v243 = vpop.f32.mrf.mxu0
    %v244 = vadd.f32 0.0, %v243
    %v245 = vpop.f32.mrf.mxu0
    %246 = vdwg.mxu0
    %v247 = vrot.slane %v244, 4
    %v248 = vadd.f32 %v244, %v247
    %v249 = vrot.slane %v248, 2
    %v250 = vadd.f32 %v248, %v249
    %v251 = vrot.slane %v250, 1
    %v252 = vadd.f32 %v250, %v251
    %v253 = vmul.f32 %v252, %v135
    %v254 = vsub.f32 %v244, %v253
    %v255 = vmul.f32 %v254, %v254
    %v256 = vrot.slane %v255, 4
    %v257 = vadd.f32 %v255, %v256
    %v258 = vrot.slane %v257, 2
    %v259 = vadd.f32 %v257, %v258
    %v260 = vrot.slane %v259, 1
    %v261 = vadd.f32 %v259, %v260
    %v262 = vmul.f32 %v261, %v135
    %v263 = vadd.f32 %v262, 1e-05
    %v264 = vrsqrt.pop %v263
    %v265 = vmul.f32 %v264, %v263
    %v266 = vmul.f32 %v265, %v264
    %v267 = vmul.f32 0.5, %v266
    %v268 = vsub.f32 1.5, %v267
    %v269 = vmul.f32 %v264, %v268
    %vm270 = vweird.f32 %v263
    %vm271 = vweird.f32 %v264
    %vm272 = vmor %vm270, %vm271
    %v273 = vsel %vm272, %v264, %v269
    %v274 = vmul.f32 %v183, %v273
    %v276 = vperm.slane %v274, 0
    %v278 = vmul.f32 %v254, %v276
    %v280 = vperm.slane %v184, 0
    %v282 = vadd.f32 %v278, %v280
    %v283 = vmax.f32 %v282, 0.0
    %v284 = vpack.c.bf16 %v283, %v283
    %v285 = vld [vmem:[#allocation8] sm:$0xf]
    %v286 = vld [vmem:[#allocation8 + $0x4] sm:$0xf]
    %v287 = vld [vmem:[#allocation8 + $0x8] sm:$0xf]
    %v288 = vld [vmem:[#allocation8 + $0xc] sm:$0xf]
    %v289 = vld [vmem:[#allocation8 + $0x10] sm:$0xf]
    %v290 = vld [vmem:[#allocation8 + $0x14] sm:$0xf]
    %v291 = vld [vmem:[#allocation8 + $0x18] sm:$0xf]
    %v292 = vld [vmem:[#allocation8 + $0x1c] sm:$0xf]
    %v293 = vld [vmem:[#allocation8 + $0x20] sm:$0xf]
    %v294 = vld [vmem:[#allocation8 + $0x24] sm:$0xf]
    %v295 = vld [vmem:[#allocation8 + $0x28] sm:$0xf]
    %v296 = vld [vmem:[#allocation8 + $0x2c] sm:$0xf]
    %v297 = vld [vmem:[#allocation8 + $0x30] sm:$0xf]
    %v298 = vld [vmem:[#allocation8 + $0x34] sm:$0xf]
    %v299 = vld [vmem:[#allocation8 + $0x38] sm:$0xf]
    %v300 = vld [vmem:[#allocation8 + $0x3c] sm:$0xf]
    %v301 = vld [vmem:[%s8] sm:$0x1]
    %v303 = vperm.slane %v301, 0
    %v321 = vunpack.c.l.b16 %v285
    %v322 = vunpack.c.l.b16 %v286
    %v323 = vunpack.c.l.b16 %v287
    %v324 = vunpack.c.l.b16 %v288
    %v325 = vunpack.c.l.b16 %v289
    %v326 = vunpack.c.l.b16 %v290
    %v327 = vunpack.c.l.b16 %v291
    %v328 = vunpack.c.l.b16 %v292
    %v329 = vunpack.c.l.b16 %v293
    %v330 = vunpack.c.l.b16 %v294
    %v331 = vunpack.c.l.b16 %v295
    %v332 = vunpack.c.l.b16 %v296
    %v333 = vunpack.c.l.b16 %v297
    %v334 = vunpack.c.l.b16 %v298
    %v335 = vunpack.c.l.b16 %v299
    %v336 = vunpack.c.l.b16 %v300
    %v337 = vpack.c.b16 %v322, %v321
    %v338 = vpack.c.b16 %v324, %v323
    %v339 = vpack.c.b16 %v326, %v325
    %v340 = vpack.c.b16 %v328, %v327
    %v341 = vpack.c.b16 %v330, %v329
    %v342 = vpack.c.b16 %v332, %v331
    %v343 = vpack.c.b16 %v334, %v333
    %v344 = vpack.c.b16 %v336, %v335
    %353 = vmatpush.bf16.msra.mxu0 %v344
    %354 = vmatpush.bf16.msra.mxu0 %v343
    %355 = vmatpush.bf16.msra.mxu0 %v342
    %356 = vmatpush.bf16.msra.mxu0 %v341
    %357 = vmatpush.bf16.msra.mxu0 %v340
    %358 = vmatpush.bf16.msra.mxu0 %v339
    %359 = vmatpush.bf16.msra.mxu0 %v338
    %360 = vmatpush.bf16.msra.mxu0 %v337
    %361 = vmatmul.bf16.gmra.mxu0 %v284
    %v362 = vpop.f32.mrf.mxu0
    %v363 = vadd.f32 %v303, %v362
    %v364 = vpop.f32.mrf.mxu0
    %365 = vdwg.mxu0
    %366 = vst [vmem:[#allocation10] sm:$0xff] %v363
    // Predicated region
    $region54: #{tpu_custom_call.1} parent=1 // pred_check
      _
    $region55: #{tpu_custom_call.1} parent=1 // pred_check_branch
      %368 = sbr.rel (0) target = $region57
    $region56: #{tpu_custom_call.1} parent=1 // pred_region
      %370 = vsyncadd [#allocation4], 0
      %s372 = sshll.u32 [#allocation10], 4
      %s373 = int_to_ptr.vmem [resolvable:$true] %s372
      %s374 = sshll.u32 %s9, 4
      %s375 = int_to_ptr.hbm [resolvable:$true] %s374
      %377 = dma.vmem_to_hbm [thread:$0]  %s373, 128, %s375, [#allocation4]
    $region57: #{tpu_custom_call.1} parent=1 // pred_fallthru
      _
    // Predicated region
    $region58: #{tpu_custom_call.1} parent=1 // pred_check
      _
    $region59: #{tpu_custom_call.1} parent=1 // pred_check_branch
      %379 = sbr.rel (0) target = $region61
    $region60: #{tpu_custom_call.1} parent=1 // pred_region
      %381 = dma.done [#allocation4], 128
    $region61: #{tpu_custom_call.1} parent=1 // pred_fallthru
      _
    %382 = vsyncpa [#allocation3], 1
    %383 = vsyncpa [#allocation6], 1
    %384 = vsyncpa [#allocation9], 1
    %385 = vsyncpa [#allocation4], 1

</llo_original>
